<compile_context>
chip_gen: v5e
topology: v5e:2x2
jax: 0.10.0
libtpu: 0.0.40
codegen_flags: <defaults>
</compile_context>

<pallas_src>
import functools

import jax
import jax.numpy as jnp
from jax import lax
from jax.experimental import pallas as pl
from jax.experimental.pallas import tpu as pltpu


def _softmax_lastdim(x):
    """Numerically-stable softmax over the last axis, using reciprocal+mul."""
    m = jnp.max(x, axis=-1, keepdims=True)
    e = jnp.exp(x - m)
    s = jnp.sum(e, axis=-1, keepdims=True)
    return e * pl.reciprocal(s)  # exact reciprocal (EUP path), keeps f32 accuracy


def cls_branch_kernel(feat_ref, patterns_ref, w_ref, b_ref, a_hat_ref, pred_ref,
                      *, B, T):
    # feat_ref:     (B*T, D)  whole batch, rows flattened
    # patterns_ref: (N, D)
    # w_ref:        (C, D)    nn.Linear weight, native layout
    # b_ref:        (1, C)    nn.Linear bias
    # a_hat_ref:    (B, N)    output 1
    # pred_ref:     (B, C)    output 2
    feat = feat_ref[...]                      # (BT, D)
    patterns = patterns_ref[...]              # (N, D)
    BT = B * T

    # L2-normalize rows (feat / ||feat||, patterns / ||patterns||) via rsqrt.
    # (No epsilon, matching torch reference semantics.)
    feat_n = feat * lax.rsqrt(jnp.sum(feat * feat, axis=-1, keepdims=True))
    pat_n = patterns * lax.rsqrt(jnp.sum(patterns * patterns, axis=-1, keepdims=True))

    # a_similarity = feat_norm @ pattern_norm.T  -> (BT, N), softmax over N.
    sim = lax.dot_general(
        feat_n, pat_n,
        dimension_numbers=(((1,), (1,)), ((), ())),
        preferred_element_type=jnp.float32,
    )                                          # (BT, N)
    sim = _softmax_lastdim(sim)

    # a_hat[b] = sum_t sim[b*T + t]  -> segment sum over T done as a tiny
    # (B, BT) x (BT, N) matmul with an iota-built selection matrix (avoids an
    # in-kernel sublane-splitting reshape).
    row = lax.broadcasted_iota(jnp.int32, (B, BT), 0)
    col = lax.broadcasted_iota(jnp.int32, (B, BT), 1)
    sel = ((col >= row * T) & (col < (row + 1) * T)).astype(jnp.float32)
    a_hat = jnp.dot(sel, sim, preferred_element_type=jnp.float32)   # (B, N)
    a_hat_ref[...] = a_hat.astype(a_hat_ref.dtype)

    # cls_feature = softmax(a_hat) @ patterns  -> (B, D)
    wts = _softmax_lastdim(a_hat)
    cls_feat = jnp.dot(wts, patterns, preferred_element_type=jnp.float32)

    # pred = cls_feature @ W^T + b  -> (B, C); contract on D with W in (C, D).
    pred = lax.dot_general(
        cls_feat, w_ref[...],
        dimension_numbers=(((1,), (1,)), ((), ())),
        preferred_element_type=jnp.float32,
    ) + b_ref[...]
    pred_ref[...] = pred.astype(pred_ref.dtype)


def cls_branch(feat, patterns, weight, bias):
    """feat: (B, T, D); patterns: (N, D); weight: (C, D) [nn.Linear]; bias: (C,)."""
    B, T, D = feat.shape
    N, _ = patterns.shape
    C = weight.shape[0]
    BT = B * T

    feat2d = feat.reshape(BT, D)     # free contiguous reshape in the wrapper
    b2 = bias.reshape(1, C)

    out_shapes = (
        jax.ShapeDtypeStruct((B, N), jnp.float32),
        jax.ShapeDtypeStruct((B, C), jnp.float32),
    )

    kernel = functools.partial(cls_branch_kernel, B=B, T=T)

    a_hat, pred = pl.pallas_call(
        kernel,
        out_shape=out_shapes,
        grid_spec=pltpu.PrefetchScalarGridSpec(
            num_scalar_prefetch=0,
            grid=(1,),                                        # single step: whole batch
            in_specs=[
                pl.BlockSpec((BT, D), lambda i: (0, 0)),      # feat (flattened batch)
                pl.BlockSpec((N, D), lambda i: (0, 0)),       # patterns (full)
                pl.BlockSpec((C, D), lambda i: (0, 0)),       # classifier W (native layout)
                pl.BlockSpec((1, C), lambda i: (0, 0)),       # classifier bias
            ],
            out_specs=[
                pl.BlockSpec((B, N), lambda i: (0, 0)),       # a_hat
                pl.BlockSpec((B, C), lambda i: (0, 0)),       # pred_result
            ],
        ),
        compiler_params=pltpu.CompilerParams(
            dimension_semantics=("arbitrary",),
        ),
    )(feat2d, patterns, weight, b2)
    return a_hat, pred


def cls_branch_ref(feat, patterns, weight, bias):
    feat_norm = feat / jnp.linalg.norm(feat, axis=2, keepdims=True)
    pat_norm = patterns / jnp.linalg.norm(patterns, axis=1, keepdims=True)
    sim = jax.nn.softmax(jnp.einsum("btd,nd->btn", feat_norm, pat_norm), axis=-1)
    a_hat = jnp.sum(sim, axis=1)
    cls_feat = jax.nn.softmax(a_hat, axis=-1) @ patterns
    pred = cls_feat @ weight.T + bias
    return a_hat, pred


if __name__ == "__main__":
    # Small shapes consistent with the module: B x T x pattern_dim feat,
    # N x pattern_dim patterns, Linear(pattern_dim, out_dim) classifier.
    B, T, D, N, C = 2, 10, 128, 8, 16   # pattern_dim=128, out_dim=16, tau=1 (unused in fwd)

    key = jax.random.PRNGKey(0)
    k1, k2, k3, k4 = jax.random.split(key, 4)
    feat = jax.random.normal(k1, (B, T, D), jnp.float32)
    patterns = jax.random.normal(k2, (N, D), jnp.float32)
    # Deterministic synthetic init for nn.Linear(pattern_dim, out_dim)
    weight = jax.random.normal(k3, (C, D), jnp.float32) * (1.0 / jnp.sqrt(D))
    bias = jax.random.normal(k4, (C,), jnp.float32) * 0.01

    a_hat, pred = cls_branch(feat, patterns, weight, bias)
    jax.block_until_ready((a_hat, pred))

    a_hat_ref, pred_ref = cls_branch_ref(feat, patterns, weight, bias)
    assert jnp.allclose(a_hat, a_hat_ref, atol=1e-4, rtol=1e-4)
    assert jnp.allclose(pred, pred_ref, atol=1e-3, rtol=1e-3)

    print("KERNEL_OK")
</pallas_src>

<mosaic_0001>
module attributes {stable_mosaic.version = 11 : i64} {
  func.func @cls_branch_kernel(%arg0: i32, %arg1: memref<20x128xf32, #tpu.memory_space<vmem>>, %arg2: memref<8x128xf32, #tpu.memory_space<vmem>>, %arg3: memref<16x128xf32, #tpu.memory_space<vmem>>, %arg4: memref<1x16xf32, #tpu.memory_space<vmem>>, %arg5: memref<2x8xf32, #tpu.memory_space<vmem>>, %arg6: memref<2x16xf32, #tpu.memory_space<vmem>>) attributes {dimension_semantics = [#tpu.dimension_semantics<arbitrary>], iteration_bounds = array<i64: 1>, scalar_prefetch = 0 : i64, scratch_operands = 0 : i64, tpu.core_type = #tpu.core_type<tc>, window_params = [{pipeline_mode = #tpu.pipeline_mode<synchronous>, transform_indices = @transform_0, window_bounds = array<i64: 20, 128>}, {pipeline_mode = #tpu.pipeline_mode<synchronous>, transform_indices = @transform_1, window_bounds = array<i64: 8, 128>}, {pipeline_mode = #tpu.pipeline_mode<synchronous>, transform_indices = @transform_2, window_bounds = array<i64: 16, 128>}, {pipeline_mode = #tpu.pipeline_mode<synchronous>, transform_indices = @transform_3, window_bounds = array<i64: 1, 16>}, {pipeline_mode = #tpu.pipeline_mode<synchronous>, transform_indices = @transform_4, window_bounds = array<i64: 2, 8>}, {pipeline_mode = #tpu.pipeline_mode<synchronous>, transform_indices = @transform_5, window_bounds = array<i64: 2, 16>}]} {
    %c0 = arith.constant 0 : index
    %c0_0 = arith.constant 0 : index
    %0 = vector.load %arg1[%c0, %c0_0] : memref<20x128xf32, #tpu.memory_space<vmem>>, vector<20x128xf32>
    %c0_1 = arith.constant 0 : index
    %c0_2 = arith.constant 0 : index
    %1 = vector.load %arg2[%c0_1, %c0_2] : memref<8x128xf32, #tpu.memory_space<vmem>>, vector<8x128xf32>
    %2 = arith.mulf %0, %0 : vector<20x128xf32>
    %cst = arith.constant dense<0.000000e+00> : vector<20xf32>
    %3 = vector.multi_reduction <add>, %2, %cst [1] : vector<20x128xf32> to vector<20xf32>
    %4 = vector.shape_cast %3 : vector<20xf32> to vector<20x1xf32>
    %5 = math.rsqrt %4 : vector<20x1xf32>
    %6 = vector.broadcast %5 : vector<20x1xf32> to vector<20x128xf32>
    %7 = arith.mulf %0, %6 : vector<20x128xf32>
    %8 = arith.mulf %1, %1 : vector<8x128xf32>
    %cst_3 = arith.constant dense<0.000000e+00> : vector<8xf32>
    %9 = vector.multi_reduction <add>, %8, %cst_3 [1] : vector<8x128xf32> to vector<8xf32>
    %10 = vector.shape_cast %9 : vector<8xf32> to vector<8x1xf32>
    %11 = math.rsqrt %10 : vector<8x1xf32>
    %12 = vector.broadcast %11 : vector<8x1xf32> to vector<8x128xf32>
    %13 = arith.mulf %1, %12 : vector<8x128xf32>
    %cst_4 = arith.constant dense<0.000000e+00> : vector<20x8xf32>
    %14 = tpu.matmul %7, %13, %cst_4 {dimension_numbers = #tpu.dot_dimension_numbers<[1], [1], [0], [0], [0, 0, 1, 0], [], []>} : vector<20x128xf32>, vector<8x128xf32>, vector<20x8xf32> -> vector<20x8xf32>
    %cst_5 = arith.constant dense<0xFF800000> : vector<20xf32>
    %15 = vector.multi_reduction <maximumf>, %14, %cst_5 [1] : vector<20x8xf32> to vector<20xf32>
    %16 = vector.shape_cast %15 : vector<20xf32> to vector<20x1xf32>
    %17 = vector.broadcast %16 : vector<20x1xf32> to vector<20x8xf32>
    %18 = arith.subf %14, %17 : vector<20x8xf32>
    %19 = math.exp %18 : vector<20x8xf32>
    %cst_6 = arith.constant dense<0.000000e+00> : vector<20xf32>
    %20 = vector.multi_reduction <add>, %19, %cst_6 [1] : vector<20x8xf32> to vector<20xf32>
    %21 = vector.shape_cast %20 : vector<20xf32> to vector<20x1xf32>
    %22 = tpu.reciprocal %21 : vector<20x1xf32> -> vector<20x1xf32>
    %23 = vector.broadcast %22 : vector<20x1xf32> to vector<20x8xf32>
    %24 = arith.mulf %19, %23 : vector<20x8xf32>
    %25 = tpu.iota {dimensions = array<i32: 0>} : vector<2x20xi32>
    %26 = tpu.iota {dimensions = array<i32: 1>} : vector<2x20xi32>
    %c10_i32 = arith.constant 10 : i32
    %27 = vector.broadcast %c10_i32 : i32 to vector<2x20xi32>
    %28 = arith.muli %25, %27 : vector<2x20xi32>
    %29 = arith.cmpi sge, %26, %28 : vector<2x20xi32>
    %c1_i32 = arith.constant 1 : i32
    %30 = vector.broadcast %c1_i32 : i32 to vector<2x20xi32>
    %31 = arith.addi %25, %30 : vector<2x20xi32>
    %c10_i32_7 = arith.constant 10 : i32
    %32 = vector.broadcast %c10_i32_7 : i32 to vector<2x20xi32>
    %33 = arith.muli %31, %32 : vector<2x20xi32>
    %34 = arith.cmpi slt, %26, %33 : vector<2x20xi32>
    %35 = arith.andi %29, %34 : vector<2x20xi1>
    %36 = arith.extui %35 : vector<2x20xi1> to vector<2x20xi32>
    %37 = arith.sitofp %36 : vector<2x20xi32> to vector<2x20xf32>
    %cst_8 = arith.constant dense<0.000000e+00> : vector<2x8xf32>
    %38 = tpu.matmul %37, %24, %cst_8 {dimension_numbers = #tpu.dot_dimension_numbers<[1], [0], [0], [1], [0, 0, 1, 1], [], []>} : vector<2x20xf32>, vector<20x8xf32>, vector<2x8xf32> -> vector<2x8xf32>
    %c0_9 = arith.constant 0 : index
    %c0_10 = arith.constant 0 : index
    %39 = vector.load %arg5[%c0_9, %c0_10] : memref<2x8xf32, #tpu.memory_space<vmem>>, vector<2x8xf32>
    tpu.vector_store %arg5[%c0_9, %c0_10], %38 {strides = array<i32>} : memref<2x8xf32, #tpu.memory_space<vmem>>, vector<2x8xf32>,
    %cst_11 = arith.constant dense<0xFF800000> : vector<2xf32>
    %40 = vector.multi_reduction <maximumf>, %38, %cst_11 [1] : vector<2x8xf32> to vector<2xf32>
    %41 = vector.shape_cast %40 : vector<2xf32> to vector<2x1xf32>
    %42 = vector.broadcast %41 : vector<2x1xf32> to vector<2x8xf32>
    %43 = arith.subf %38, %42 : vector<2x8xf32>
    %44 = math.exp %43 : vector<2x8xf32>
    %cst_12 = arith.constant dense<0.000000e+00> : vector<2xf32>
    %45 = vector.multi_reduction <add>, %44, %cst_12 [1] : vector<2x8xf32> to vector<2xf32>
    %46 = vector.shape_cast %45 : vector<2xf32> to vector<2x1xf32>
    %47 = tpu.reciprocal %46 : vector<2x1xf32> -> vector<2x1xf32>
    %48 = vector.broadcast %47 : vector<2x1xf32> to vector<2x8xf32>
    %49 = arith.mulf %44, %48 : vector<2x8xf32>
    %cst_13 = arith.constant dense<0.000000e+00> : vector<2x128xf32>
    %50 = tpu.matmul %49, %1, %cst_13 {dimension_numbers = #tpu.dot_dimension_numbers<[1], [0], [0], [1], [0, 0, 1, 1], [], []>} : vector<2x8xf32>, vector<8x128xf32>, vector<2x128xf32> -> vector<2x128xf32>
    %c0_14 = arith.constant 0 : index
    %c0_15 = arith.constant 0 : index
    %51 = vector.load %arg3[%c0_14, %c0_15] : memref<16x128xf32, #tpu.memory_space<vmem>>, vector<16x128xf32>
    %cst_16 = arith.constant dense<0.000000e+00> : vector<2x16xf32>
    %52 = tpu.matmul %50, %51, %cst_16 {dimension_numbers = #tpu.dot_dimension_numbers<[1], [1], [0], [0], [0, 0, 1, 0], [], []>} : vector<2x128xf32>, vector<16x128xf32>, vector<2x16xf32> -> vector<2x16xf32>
    %c0_17 = arith.constant 0 : index
    %c0_18 = arith.constant 0 : index
    %53 = vector.load %arg4[%c0_17, %c0_18] : memref<1x16xf32, #tpu.memory_space<vmem>>, vector<1x16xf32>
    %54 = vector.broadcast %53 : vector<1x16xf32> to vector<2x16xf32>
    %55 = arith.addf %52, %54 : vector<2x16xf32>
    %c0_19 = arith.constant 0 : index
    %c0_20 = arith.constant 0 : index
    %56 = vector.load %arg6[%c0_19, %c0_20] : memref<2x16xf32, #tpu.memory_space<vmem>>, vector<2x16xf32>
    tpu.vector_store %arg6[%c0_19, %c0_20], %55 {strides = array<i32>} : memref<2x16xf32, #tpu.memory_space<vmem>>, vector<2x16xf32>,
    return
  }
  func.func @transform_0(%arg0: i32) -> (i32, i32) {
    %c0_i32 = arith.constant 0 : i32
    %c0_i32_0 = arith.constant 0 : i32
    %c0_i32_1 = arith.constant 0 : i32
    return %c0_i32, %c0_i32_0 : i32, i32
  }
  func.func @transform_1(%arg0: i32) -> (i32, i32) {
    %c0_i32 = arith.constant 0 : i32
    %c0_i32_0 = arith.constant 0 : i32
    %c0_i32_1 = arith.constant 0 : i32
    return %c0_i32, %c0_i32_0 : i32, i32
  }
  func.func @transform_2(%arg0: i32) -> (i32, i32) {
    %c0_i32 = arith.constant 0 : i32
    %c0_i32_0 = arith.constant 0 : i32
    %c0_i32_1 = arith.constant 0 : i32
    return %c0_i32, %c0_i32_0 : i32, i32
  }
  func.func @transform_3(%arg0: i32) -> (i32, i32) {
    %c0_i32 = arith.constant 0 : i32
    %c0_i32_0 = arith.constant 0 : i32
    %c0_i32_1 = arith.constant 0 : i32
    return %c0_i32, %c0_i32_0 : i32, i32
  }
  func.func @transform_4(%arg0: i32) -> (i32, i32) {
    %c0_i32 = arith.constant 0 : i32
    %c0_i32_0 = arith.constant 0 : i32
    %c0_i32_1 = arith.constant 0 : i32
    return %c0_i32, %c0_i32_0 : i32, i32
  }
  func.func @transform_5(%arg0: i32) -> (i32, i32) {
    %c0_i32 = arith.constant 0 : i32
    %c0_i32_0 = arith.constant 0 : i32
    %c0_i32_1 = arith.constant 0 : i32
    return %c0_i32, %c0_i32_0 : i32, i32
  }
}

</mosaic_0001>

<llo_original>
// kernel: tpu_custom_call.1
$region0: #{tpu_custom_call.1}
  #allocation0 [shape = 'u32[]', space=smem, size = 0x4, offset = 0x4, fixed_abs, tag = 'smem constant byte address 0x4 - core index']
  #allocation1 [shape = 'u32[72,128]{1,0:T(1,128)}', space=vmem, size = 0x9000, scoped, tag = 'internal scratch']
  %s0 = inlined_call_operand.hbm [shape: f32[20,128], index: 0, kind: input, shape index: {}]
  %s1 = inlined_call_operand.hbm [shape: f32[8,128], index: 1, kind: input, shape index: {}]
  %s2 = inlined_call_operand.hbm [shape: f32[16,128], index: 2, kind: input, shape index: {}]
  %s3 = inlined_call_operand.vmem [shape: f32[1,16], index: 3, kind: input, shape index: {}]
  %s4 = inlined_call_operand.hbm [shape: f32[2,8], index: 4, kind: output, shape index: {0}]
  %s5 = inlined_call_operand.hbm [shape: f32[2,16], index: 5, kind: output, shape index: {1}]
  %6 = xla_tuple %s4, %s5
  %s7 = sld [smem:[#allocation0]]
  $region46: #{tpu_custom_call.1} parent=0
    _
  %s9 = ssub.s32 1, %s7
  %s10 = scalar_select 0, %s9, %s7
  $region1: #{tpu_custom_call.1} parent=0
    #allocation2 [shape = 'u8[12288]{0}', space=vmem, size = 0x3000, scoped, tag = 'input window, operand 0, single buffered']
    #allocation3 [shape = 's32[1]{0}', space=sflag, size = 0x4, scoped, tag = 'scoped memory for tpu_custom_call.1']
    #allocation4 [shape = 's32[1]{0}', space=sflag, size = 0x4, scoped, tag = 'scoped memory for tpu_custom_call.1']
    #allocation5 [shape = 'u8[4096]{0}', space=vmem, size = 0x1000, scoped, tag = 'input window, operand 1, single buffered']
    #allocation6 [shape = 's32[1]{0}', space=sflag, size = 0x4, scoped, tag = 'scoped memory for tpu_custom_call.1']
    #allocation7 [shape = 'u8[8192]{0}', space=vmem, size = 0x2000, scoped, tag = 'input window, operand 2, single buffered']
    #allocation8 [shape = 'u8[1024]{0}', space=vmem, size = 0x400, scoped, tag = 'output window, operand 0, single buffered']
    #allocation9 [shape = 'u8[1024]{0}', space=vmem, size = 0x400, scoped, tag = 'output window, operand 1, single buffered']
    #allocation10 [shape = 's32[1]{0}', space=sflag, size = 0x4, scoped, tag = 'scoped memory for tpu_custom_call.1']
    %11 = vsyncpa [#allocation3], 0
    %12 = vsyncpa [#allocation6], 0
    %13 = vsyncpa [#allocation4], 0
    %14 = vsyncpa [#allocation10], 0
    // Predicated region
    $region2: #{tpu_custom_call.1} parent=1 // pred_check
      _
    $region3: #{tpu_custom_call.1} parent=1 // pred_check_branch
      %16 = sbr.rel (0) target = $region5
    $region4: #{tpu_custom_call.1} parent=1 // pred_region
      %18 = vsyncadd [#allocation3], 0
      %s19 = sshll.u32 %s0, 4
      %s20 = int_to_ptr.hbm [resolvable:$true] %s19
      %s21 = sshll.u32 [#allocation2], 4
      %s22 = int_to_ptr.vmem [resolvable:$true] %s21
      %27 = dma.hbm_to_vmem [thread:$0]  %s20, 384, %s22, [#allocation3], 128, 128, 8
    $region5: #{tpu_custom_call.1} parent=1 // pred_fallthru
      _
    // Predicated region
    $region6: #{tpu_custom_call.1} parent=1 // pred_check
      _
    $region7: #{tpu_custom_call.1} parent=1 // pred_check_branch
      %29 = sbr.rel (0) target = $region9
    $region8: #{tpu_custom_call.1} parent=1 // pred_region
      %31 = vsyncadd [#allocation6], 0
      %s33 = sshll.u32 %s1, 4
      %s34 = int_to_ptr.hbm [resolvable:$true] %s33
      %s35 = sshll.u32 [#allocation5], 4
      %s36 = int_to_ptr.vmem [resolvable:$true] %s35
      %38 = dma.hbm_to_vmem [thread:$0]  %s34, 128, %s36, [#allocation6]
    $region9: #{tpu_custom_call.1} parent=1 // pred_fallthru
      _
    // Predicated region
    $region10: #{tpu_custom_call.1} parent=1 // pred_check
      _
    $region11: #{tpu_custom_call.1} parent=1 // pred_check_branch
      %40 = sbr.rel (0) target = $region13
    $region12: #{tpu_custom_call.1} parent=1 // pred_region
      %42 = vsyncadd [#allocation6], 0
      %s43 = sshll.u32 %s2, 4
      %s44 = int_to_ptr.hbm [resolvable:$true] %s43
      %s45 = sshll.u32 [#allocation7], 4
      %s46 = int_to_ptr.vmem [resolvable:$true] %s45
      %51 = dma.hbm_to_vmem [thread:$0]  %s44, 256, %s46, [#allocation6], 128, 128, 8
    $region13: #{tpu_custom_call.1} parent=1 // pred_fallthru
      _
    // Predicated region
    $region14: #{tpu_custom_call.1} parent=1 // pred_check
      _
    $region15: #{tpu_custom_call.1} parent=1 // pred_check_branch
      %53 = sbr.rel (0) target = $region17
    $region16: #{tpu_custom_call.1} parent=1 // pred_region
      _
    $region17: #{tpu_custom_call.1} parent=1 // pred_fallthru
      _
    // Predicated region
    $region18: #{tpu_custom_call.1} parent=1 // pred_check
      _
    $region19: #{tpu_custom_call.1} parent=1 // pred_check_branch
      %55 = sbr.rel (0) target = $region21
    $region20: #{tpu_custom_call.1} parent=1 // pred_region
      %57 = dma.done [#allocation3], 384
    $region21: #{tpu_custom_call.1} parent=1 // pred_fallthru
      _
    // Predicated region
    $region22: #{tpu_custom_call.1} parent=1 // pred_check
      _
    $region23: #{tpu_custom_call.1} parent=1 // pred_check_branch
      %59 = sbr.rel (0) target = $region25
    $region24: #{tpu_custom_call.1} parent=1 // pred_region
      %61 = dma.done [#allocation6], 128
    $region25: #{tpu_custom_call.1} parent=1 // pred_fallthru
      _
    // Predicated region
    $region26: #{tpu_custom_call.1} parent=1 // pred_check
      _
    $region27: #{tpu_custom_call.1} parent=1 // pred_check_branch
      %63 = sbr.rel (0) target = $region29
    $region28: #{tpu_custom_call.1} parent=1 // pred_region
      %65 = dma.done [#allocation6], 256
    $region29: #{tpu_custom_call.1} parent=1 // pred_fallthru
      _
    %v66 = vld [vmem:[#allocation2] sm:$0xff]
    %v67 = vld [vmem:[#allocation2 + $0x8] sm:$0xff]
    %v68 = vld [vmem:[#allocation2 + $0x10] sm:$0xf]
    %v69 = vld [vmem:[#allocation5] sm:$0xff]
    %v70 = vmul.f32 %v66, %v66
    %v71 = vmul.f32 %v67, %v67
    %v72 = vmul.f32 %v68, %v68
    %73 = vadd.xlane.f32.xlu0 %v70
    %v74 = vpop.xlane.xlu0 %73
    %75 = vadd.xlane.f32.xlu0 %v71
    %v76 = vpop.xlane.xlu0 %75
    %vm77 = vcmask 1043456
    %v78 = vsel %vm77, %v72, 0.0
    %79 = vadd.xlane.f32.xlu0 %v78
    %v80 = vpop.xlane.xlu0 %79
    %v81 = vrsqrt.pop %v74
    %v82 = vmul.f32 %v81, %v74
    %v83 = vmul.f32 %v82, %v81
    %v84 = vmul.f32 0.5, %v83
    %v85 = vsub.f32 1.5, %v84
    %v86 = vmul.f32 %v81, %v85
    %vm87 = vweird.f32 %v74
    %vm88 = vweird.f32 %v81
    %vm89 = vmor %vm87, %vm88
    %v90 = vsel %vm89, %v81, %v86
    %v91 = vrsqrt.pop %v76
    %v92 = vmul.f32 %v91, %v76
    %v93 = vmul.f32 %v92, %v91
    %v94 = vmul.f32 0.5, %v93
    %v95 = vsub.f32 1.5, %v94
    %v96 = vmul.f32 %v91, %v95
    %vm97 = vweird.f32 %v76
    %vm98 = vweird.f32 %v91
    %vm99 = vmor %vm97, %vm98
    %v100 = vsel %vm99, %v91, %v96
    %v101 = vrsqrt.pop %v80
    %v102 = vmul.f32 %v101, %v80
    %v103 = vmul.f32 %v102, %v101
    %v104 = vmul.f32 0.5, %v103
    %v105 = vsub.f32 1.5, %v104
    %v106 = vmul.f32 %v101, %v105
    %vm107 = vweird.f32 %v80
    %vm108 = vweird.f32 %v101
    %vm109 = vmor %vm107, %vm108
    %v110 = vsel %vm109, %v101, %v106
    %v111 = vmul.f32 %v66, %v90
    %v112 = vmul.f32 %v67, %v100
    %v113 = vmul.f32 %v68, %v110
    %v114 = vmul.f32 %v69, %v69
    %115 = vadd.xlane.f32.xlu0 %v114
    %v116 = vpop.xlane.xlu0 %115
    %v117 = vrsqrt.pop %v116
    %v118 = vmul.f32 %v117, %v116
    %v119 = vmul.f32 %v118, %v117
    %v120 = vmul.f32 0.5, %v119
    %v121 = vsub.f32 1.5, %v120
    %v122 = vmul.f32 %v117, %v121
    %vm123 = vweird.f32 %v116
    %vm124 = vweird.f32 %v117
    %vm125 = vmor %vm123, %vm124
    %v126 = vsel %vm125, %v117, %v122
    %v127 = vmul.f32 %v69, %v126
    %128 = vmatpush.xpose.msra.mxu0 0.0
    %129 = vmatpush.xpose.msra.mxu0 0.0
    %130 = vmatpush.xpose.msra.mxu0 0.0
    %131 = vmatpush.xpose.msra.mxu0 0.0
    %132 = vmatpush.xpose.msra.mxu0 0.0
    %133 = vmatpush.xpose.msra.mxu0 0.0
    %134 = vmatpush.xpose.msra.mxu0 0.0
    %135 = vmatpush.xpose.msra.mxu0 0.0
    %136 = vmatpush.xpose.msra.mxu0 0.0
    %137 = vmatpush.xpose.msra.mxu0 0.0
    %138 = vmatpush.xpose.msra.mxu0 0.0
    %139 = vmatpush.xpose.msra.mxu0 0.0
    %140 = vmatpush.xpose.msra.mxu0 0.0
    %141 = vmatpush.xpose.msra.mxu0 0.0
    %142 = vmatpush.xpose.msra.mxu0 0.0
    %143 = vmatpush.xpose.msra.mxu0 %v127
    %144 = vmatmul.f32.gmra.mxu0 %v111
    %v145 = vpop.f32.mrf.mxu0
    %v146 = vadd.f32 0.0, %v145
    %147 = vmatmul.f32.gmra.mxu0 %v112
    %v148 = vpop.f32.mrf.mxu0
    %v149 = vadd.f32 0.0, %v148
    %150 = vmatmul.f32.gmra.mxu0 %v113
    %v151 = vpop.f32.mrf.mxu0
    %v152 = vadd.f32 0.0, %v151
    %153 = vdwg.mxu0
    %vm154 = vcmask 64512
    %v155 = vsel %vm154, %v146, -inf
    %156 = vmax.xlane.f32.xlu0 %v155
    %v157 = vpop.xlane.xlu0 %156
    %v158 = vsel %vm154, %v149, -inf
    %159 = vmax.xlane.f32.xlu0 %v158
    %v160 = vpop.xlane.xlu0 %159
    %vm161 = vcmask 60416
    %v162 = vsel %vm161, %v152, -inf
    %163 = vmax.xlane.f32.xlu0 %v162
    %v164 = vpop.xlane.xlu0 %163
    %v165 = vsub.f32 %v146, %v157
    %v166 = vsub.f32 %v149, %v160
    %v167 = vsub.f32 %v152, %v164
    %v168 = vmul.f32 %v165, 1.442695
    %v169 = vpow.pop %v168
    %v170 = vmul.f32 %v166, 1.442695
    %v171 = vpow.pop %v170
    %v172 = vmul.f32 %v167, 1.442695
    %v173 = vpow.pop %v172
    %v174 = vsel %vm154, %v169, 0.0
    %175 = vadd.xlane.f32.xlu0 %v174
    %v176 = vpop.xlane.xlu0 %175
    %v177 = vsel %vm154, %v171, 0.0
    %178 = vadd.xlane.f32.xlu0 %v177
    %v179 = vpop.xlane.xlu0 %178
    %v180 = vsel %vm161, %v173, 0.0
    %181 = vadd.xlane.f32.xlu0 %v180
    %v182 = vpop.xlane.xlu0 %181
    %v183 = vrcp.pop %v176
    %v184 = vmul.f32 %v176, %v183
    %v185 = vsub.f32 1.0, %v184
    %v186 = vmul.f32 %v183, %v185
    %v187 = vadd.f32 %v183, %v186
    %vm188 = vweird.f32 %v176
    %vm189 = vweird.f32 %v183
    %vm190 = vmor %vm188, %vm189
    %v191 = vsel %vm190, %v183, %v187
    %v192 = vand.u32 2147483647, %v176
    %vm193 = vcmp.eq.f32.partialorder %v192, 8.507059e+37
    %v194 = vand.u32 %v176, 2147483648
    %v195 = vor.u32 1.1754944e-38, %v194
    %v196 = vsel %vm193, %v195, %v191
    %v197 = vrcp.pop %v179
    %v198 = vmul.f32 %v179, %v197
    %v199 = vsub.f32 1.0, %v198
    %v200 = vmul.f32 %v197, %v199
    %v201 = vadd.f32 %v197, %v200
    %vm202 = vweird.f32 %v179
    %vm203 = vweird.f32 %v197
    %vm204 = vmor %vm202, %vm203
    %v205 = vsel %vm204, %v197, %v201
    %v206 = vand.u32 2147483647, %v179
    %vm207 = vcmp.eq.f32.partialorder %v206, 8.507059e+37
    %v208 = vand.u32 %v179, 2147483648
    %v209 = vor.u32 1.1754944e-38, %v208
    %v210 = vsel %vm207, %v209, %v205
    %v211 = vrcp.pop %v182
    %v212 = vmul.f32 %v182, %v211
    %v213 = vsub.f32 1.0, %v212
    %v214 = vmul.f32 %v211, %v213
    %v215 = vadd.f32 %v211, %v214
    %vm216 = vweird.f32 %v182
    %vm217 = vweird.f32 %v211
    %vm218 = vmor %vm216, %vm217
    %v219 = vsel %vm218, %v211, %v215
    %v220 = vand.u32 2147483647, %v182
    %vm221 = vcmp.eq.f32.partialorder %v220, 8.507059e+37
    %v222 = vand.u32 %v182, 2147483648
    %v223 = vor.u32 1.1754944e-38, %v222
    %v224 = vsel %vm221, %v223, %v219
    %v225 = vmul.f32 %v169, %v196
    %v226 = vmul.f32 %v171, %v210
    %v227 = vmul.f32 %v173, %v224
    %v228 = vlaneseq
    %v229 = vshrl.u32 %v228, 7
    %v230 = vlaneseq
    %v231 = vand.u32 %v230, 127
    %v232 = vmul.u32 %v229, 10
    %vm233 = vcmp.ge.s32.totalorder %v231, %v232
    %v234 = vadd.s32 %v229, 1
    %v235 = vmul.u32 %v234, 10
    %vm236 = vcmp.lt.s32.totalorder %v231, %v235
    %vm237 = vmand %vm233, %vm236
    %v238 = vsel %vm237, 1, 0
    %v239 = vcvt.s32.f32 %v238
    %vm240 = vcmask 162816
    %v242 = vsel %vm240, %v239, 0
    %v245 = vsel %vm77, %v227, 0
    %247 = vmatpush.msra.mxu0 0.0
    %248 = vmatpush.msra.mxu0 0.0
    %249 = vmatpush.msra.mxu0 0.0
    %250 = vmatpush.msra.mxu0 0.0
    %251 = vmatpush.msra.mxu0 0.0
    %252 = vmatpush.msra.mxu0 0.0
    %253 = vmatpush.msra.mxu0 0.0
    %254 = vmatpush.msra.mxu0 0.0
    %255 = vmatpush.msra.mxu0 0.0
    %256 = vmatpush.msra.mxu0 0.0
    %257 = vmatpush.msra.mxu0 0.0
    %258 = vmatpush.msra.mxu0 0.0
    %259 = vmatpush.msra.mxu0 0.0
    %260 = vmatpush.msra.mxu0 %v245
    %261 = vmatpush.msra.mxu0 %v226
    %262 = vmatpush.msra.mxu0 %v225
    %263 = vmatmul.f32.gmra.mxu0 %v242
    %v264 = vpop.f32.mrf.mxu0
    %v265 = vadd.f32 0.0, %v264
    %266 = vdwg.mxu0
    %vm267 = vcmask 58368
    %268 = vst.msk [vmem:[#allocation8] sm:$0x3] %vm267, %v265
    %v269 = vsel %vm267, %v265, -inf
    %270 = vmax.xlane.f32.xlu0 %v269
    %v271 = vpop.xlane.xlu0 %270
    %v272 = vsub.f32 %v265, %v271
    %v273 = vmul.f32 %v272, 1.442695
    %v274 = vpow.pop %v273
    %v275 = vsel %vm267, %v274, 0.0
    %276 = vadd.xlane.f32.xlu0 %v275
    %v277 = vpop.xlane.xlu0 %276
    %v278 = vrcp.pop %v277
    %v279 = vmul.f32 %v277, %v278
    %v280 = vsub.f32 1.0, %v279
    %v281 = vmul.f32 %v278, %v280
    %v282 = vadd.f32 %v278, %v281
    %vm283 = vweird.f32 %v277
    %vm284 = vweird.f32 %v278
    %vm285 = vmor %vm283, %vm284
    %v286 = vsel %vm285, %v278, %v282
    %v287 = vand.u32 2147483647, %v277
    %vm288 = vcmp.eq.f32.partialorder %v287, 8.507059e+37
    %v289 = vand.u32 %v277, 2147483648
    %v290 = vor.u32 1.1754944e-38, %v289
    %v291 = vsel %vm288, %v290, %v286
    %v292 = vmul.f32 %v274, %v291
    %v294 = vsel %vm154, %v292, 0
    %296 = vmatpush.msra.mxu0 0.0
    %297 = vmatpush.msra.mxu0 0.0
    %298 = vmatpush.msra.mxu0 0.0
    %299 = vmatpush.msra.mxu0 0.0
    %300 = vmatpush.msra.mxu0 0.0
    %301 = vmatpush.msra.mxu0 0.0
    %302 = vmatpush.msra.mxu0 0.0
    %303 = vmatpush.msra.mxu0 0.0
    %304 = vmatpush.msra.mxu0 0.0
    %305 = vmatpush.msra.mxu0 0.0
    %306 = vmatpush.msra.mxu0 0.0
    %307 = vmatpush.msra.mxu0 0.0
    %308 = vmatpush.msra.mxu0 0.0
    %309 = vmatpush.msra.mxu0 0.0
    %310 = vmatpush.msra.mxu0 0.0
    %311 = vmatpush.msra.mxu0 %v69
    %312 = vmatmul.f32.gmra.mxu0 %v294
    %v313 = vpop.f32.mrf.mxu0
    %v314 = vadd.f32 0.0, %v313
    %315 = vdwg.mxu0
    %v316 = vld [vmem:[#allocation7] sm:$0xff]
    %v317 = vld [vmem:[#allocation7 + $0x8] sm:$0xff]
    %v318 = vld [vmem:[%s3] sm:$0x1]
    %v320 = vperm.slane %v318, 0
    %322 = vmatpush.xpose.msra.mxu0 0.0
    %323 = vmatpush.xpose.msra.mxu0 0.0
    %324 = vmatpush.xpose.msra.mxu0 0.0
    %325 = vmatpush.xpose.msra.mxu0 0.0
    %326 = vmatpush.xpose.msra.mxu0 0.0
    %327 = vmatpush.xpose.msra.mxu0 0.0
    %328 = vmatpush.xpose.msra.mxu0 0.0
    %329 = vmatpush.xpose.msra.mxu0 0.0
    %330 = vmatpush.xpose.msra.mxu0 0.0
    %331 = vmatpush.xpose.msra.mxu0 0.0
    %332 = vmatpush.xpose.msra.mxu0 0.0
    %333 = vmatpush.xpose.msra.mxu0 0.0
    %334 = vmatpush.xpose.msra.mxu0 0.0
    %335 = vmatpush.xpose.msra.mxu0 0.0
    %336 = vmatpush.xpose.msra.mxu0 %v317
    %337 = vmatpush.xpose.msra.mxu0 %v316
    %338 = vmatmul.f32.gmra.mxu0 %v314
    %v339 = vpop.f32.mrf.mxu0
    %v340 = vadd.f32 %v320, %v339
    %341 = vdwg.mxu0
    %vm342 = vcmask 123904
    %343 = vst.msk [vmem:[#allocation9] sm:$0x3] %vm342, %v340
    // Predicated region
    $region30: #{tpu_custom_call.1} parent=1 // pred_check
      _
    $region31: #{tpu_custom_call.1} parent=1 // pred_check_branch
      %345 = sbr.rel (0) target = $region33
    $region32: #{tpu_custom_call.1} parent=1 // pred_region
      %347 = vsyncadd [#allocation4], 0
      %s349 = sshll.u32 [#allocation8], 4
      %s350 = int_to_ptr.vmem [resolvable:$true] %s349
      %s351 = sshll.u32 %s4, 4
      %s352 = int_to_ptr.hbm [resolvable:$true] %s351
      %354 = dma.vmem_to_hbm [thread:$0]  %s350, 32, %s352, [#allocation4]
    $region33: #{tpu_custom_call.1} parent=1 // pred_fallthru
      _
    // Predicated region
    $region34: #{tpu_custom_call.1} parent=1 // pred_check
      _
    $region35: #{tpu_custom_call.1} parent=1 // pred_check_branch
      %356 = sbr.rel (0) target = $region37
    $region36: #{tpu_custom_call.1} parent=1 // pred_region
      %358 = vsyncadd [#allocation10], 0
      %s360 = sshll.u32 [#allocation9], 4
      %s361 = int_to_ptr.vmem [resolvable:$true] %s360
      %s362 = sshll.u32 %s5, 4
      %s363 = int_to_ptr.hbm [resolvable:$true] %s362
      %365 = dma.vmem_to_hbm [thread:$0]  %s361, 32, %s363, [#allocation10]
    $region37: #{tpu_custom_call.1} parent=1 // pred_fallthru
      _
    // Predicated region
    $region38: #{tpu_custom_call.1} parent=1 // pred_check
      _
    $region39: #{tpu_custom_call.1} parent=1 // pred_check_branch
      %367 = sbr.rel (0) target = $region41
    $region40: #{tpu_custom_call.1} parent=1 // pred_region
      %369 = dma.done [#allocation4], 32
    $region41: #{tpu_custom_call.1} parent=1 // pred_fallthru
      _
    // Predicated region
    $region42: #{tpu_custom_call.1} parent=1 // pred_check
      _
    $region43: #{tpu_custom_call.1} parent=1 // pred_check_branch
      %371 = sbr.rel (0) target = $region45
    $region44: #{tpu_custom_call.1} parent=1 // pred_region
      %373 = dma.done [#allocation10], 32
    $region45: #{tpu_custom_call.1} parent=1 // pred_fallthru
      _
    %374 = vsyncpa [#allocation3], 1
    %375 = vsyncpa [#allocation6], 1
    %376 = vsyncpa [#allocation4], 1
    %377 = vsyncpa [#allocation10], 1

</llo_original>
